<compile_context>
chip_gen: v7x
topology: tpu7x:2x2x1
jax: 0.10.0
libtpu: 0.0.40
codegen_flags: <defaults>
</compile_context>

<pallas_src>
import jax
import jax.numpy as jnp
from jax.experimental import pallas as pl
from jax.experimental.pallas import tpu as pltpu


def _round_up(x, m):
    return ((x + m - 1) // m) * m


def rnn_recurrence_kernel(xproj_ref, h0_ref, whh_ref, hout_ref):
    """Sequential tanh-RNN recurrence, fully resident in VMEM.

    xproj_ref: (T, Bp, Hp)  time-major pre-projected inputs (x_t @ W_ih^T)
    h0_ref:    (Bp, Hp)     initial hidden state
    whh_ref:   (Hp, Hp)     W_hh^T
    hout_ref:  (Bp, Hp)     final hidden state
    """
    T = xproj_ref.shape[0]

    def step(t, h):
        return jnp.tanh(
            xproj_ref[t]
            + jnp.dot(h, whh_ref[...], preferred_element_type=jnp.float32)
        )

    hout_ref[...] = jax.lax.fori_loop(0, T, step, h0_ref[...], unroll=True)


def classifier_kernel(h_ref, wcls_ref, bcls_ref, logits_ref):
    """logits tile = h @ W_cls^T[:, tile] + b[tile]; V-tiles are independent."""
    logits_ref[...] = (
        jnp.dot(h_ref[...], wcls_ref[...], preferred_element_type=jnp.float32)
        + bcls_ref[...]
    )


def sentence_generation_forward(history, params, state=None):
    """history: int32 (B, T); returns (logits (B, V), state (B, H))."""
    emb = params["embedding"]          # (V, E), row 0 == 0 (padding_idx)
    w_ih = params["w_ih"]              # (H, E)  -- PyTorch RNNCell weight_ih
    w_hh = params["w_hh"]              # (H, H)  -- PyTorch RNNCell weight_hh
    w_cls = params["w_cls"]            # (V, H)  -- nn.Linear weight
    b_cls = params["b_cls"]            # (V,)

    B, T = history.shape
    V, E = emb.shape
    H = w_hh.shape[0]

    Bp = _round_up(B, 8)       # sublane-aligned batch
    Hp = _round_up(H, 128)     # lane-aligned hidden (also pads MXU contraction dim)
    Vp = _round_up(V, 128)     # lane-aligned vocab

    # ---- Glue (plain XLA): fold the input projection into the embedding table. ----
    # emb_proj[v] = emb[v] @ W_ih^T  -> one big matmul; padding row 0 stays all-zero.
    emb_proj = jnp.dot(emb.astype(jnp.float32), w_ih.T.astype(jnp.float32))     # (V, H)
    emb_proj = jnp.pad(emb_proj, ((0, 0), (0, Hp - H)))                          # (V, Hp)
    # Gather directly in time-major layout; only the tiny index tensor is transposed.
    xproj_tm = jnp.take(emb_proj, history.T, axis=0)                             # (T, B, Hp)
    xproj_tm = jnp.pad(xproj_tm, ((0, 0), (0, Bp - B), (0, 0)))                  # (T, Bp, Hp)

    if state is None:
        h0 = jnp.zeros((Bp, Hp), jnp.float32)
    else:
        h0 = jnp.pad(state.astype(jnp.float32), ((0, Bp - B), (0, Hp - H)))

    whh_t = jnp.pad(w_hh.T.astype(jnp.float32), ((0, Hp - H), (0, Hp - H)))      # (Hp, Hp)

    # ---- Recurrence: single invocation, hidden state carried in registers/VMEM. ----
    h_last_p = pl.pallas_call(
        rnn_recurrence_kernel,
        out_shape=jax.ShapeDtypeStruct((Bp, Hp), jnp.float32),
        grid_spec=pltpu.PrefetchScalarGridSpec(
            num_scalar_prefetch=0,
            grid=(1,),
            in_specs=[
                pl.BlockSpec((T, Bp, Hp), lambda i: (0, 0, 0)),   # x @ W_ih^T, time-major
                pl.BlockSpec((Bp, Hp), lambda i: (0, 0)),          # h0
                pl.BlockSpec((Hp, Hp), lambda i: (0, 0)),          # W_hh^T
            ],
            out_specs=pl.BlockSpec((Bp, Hp), lambda i: (0, 0)),    # final hidden
        ),
        compiler_params=pltpu.CompilerParams(
            dimension_semantics=("arbitrary",)),
    )(xproj_tm, h0, whh_t)

    # ---- Classifier: separate call, tiled over (padded) vocab, parallel V axis. ----
    wcls_t = jnp.pad(w_cls.T.astype(jnp.float32), ((0, Hp - H), (0, Vp - V)))    # (Hp, Vp)
    bcls = jnp.pad(b_cls.astype(jnp.float32), (0, Vp - V)).reshape(1, Vp)        # (1, Vp)

    tv = next(t for t in (512, 256, 128) if Vp % t == 0)   # lane-dense vocab tile
    logits_p = pl.pallas_call(
        classifier_kernel,
        out_shape=jax.ShapeDtypeStruct((Bp, Vp), jnp.float32),
        grid_spec=pltpu.PrefetchScalarGridSpec(
            num_scalar_prefetch=0,
            grid=(Vp // tv,),
            in_specs=[
                pl.BlockSpec((Bp, Hp), lambda j: (0, 0)),          # final hidden (resident)
                pl.BlockSpec((Hp, tv), lambda j: (0, j)),          # W_cls^T tile
                pl.BlockSpec((1, tv), lambda j: (0, j)),           # bias tile
            ],
            out_specs=pl.BlockSpec((Bp, tv), lambda j: (0, j)),    # logits tile
        ),
        compiler_params=pltpu.CompilerParams(
            dimension_semantics=("parallel",)),
    )(h_last_p, wcls_t, bcls)

    return logits_p[:B, :V], h_last_p[:B, :H]


def init_params(key, vocab_size, embedding_dim, hidden_size):
    k1, k2, k3, k4, k5 = jax.random.split(key, 5)
    emb = 0.1 * jax.random.normal(k1, (vocab_size, embedding_dim), jnp.float32)
    emb = emb.at[0].set(0.0)  # padding_idx=0
    w_ih = 0.1 * jax.random.normal(k2, (hidden_size, embedding_dim), jnp.float32)
    w_hh = 0.1 * jax.random.normal(k3, (hidden_size, hidden_size), jnp.float32)
    w_cls = 0.1 * jax.random.normal(k4, (vocab_size, hidden_size), jnp.float32)
    b_cls = 0.1 * jax.random.normal(k5, (vocab_size,), jnp.float32)
    return dict(embedding=emb, w_ih=w_ih, w_hh=w_hh, w_cls=w_cls, b_cls=b_cls)


def reference_forward(history, params, state=None):
    """Pure-JAX reference mirroring the PyTorch module (nn.RNNCell, tanh, no bias)."""
    data = jnp.take(params["embedding"], history, axis=0)   # (B, T, E)
    B, T, _ = data.shape
    H = params["w_hh"].shape[0]
    h = jnp.zeros((B, H), jnp.float32) if state is None else state
    for t in range(T):
        h = jnp.tanh(data[:, t, :] @ params["w_ih"].T + h @ params["w_hh"].T)
    logits = h @ params["w_cls"].T + params["b_cls"]
    return logits, h


if __name__ == "__main__":
    VOCAB, EMBED, HIDDEN = 64, 32, 32
    BATCH, SEQ = 2, 8

    key = jax.random.PRNGKey(0)
    kp, kh = jax.random.split(key)
    params = init_params(kp, VOCAB, EMBED, HIDDEN)
    history = jax.random.randint(kh, (BATCH, SEQ), 0, VOCAB, dtype=jnp.int32)

    logits, state = sentence_generation_forward(history, params, state=None)
    logits = jax.block_until_ready(logits)
    state = jax.block_until_ready(state)

    ref_logits, ref_state = reference_forward(history, params, state=None)
    assert jnp.allclose(logits, ref_logits, atol=1e-4, rtol=1e-4), "logits mismatch"
    assert jnp.allclose(state, ref_state, atol=1e-4, rtol=1e-4), "state mismatch"

    print("KERNEL_OK")
</pallas_src>

<mosaic_0001>
module attributes {stable_mosaic.version = 11 : i64} {
  func.func @rnn_recurrence_kernel(%arg0: i32, %arg1: memref<8x8x128xf32, #tpu.memory_space<vmem>>, %arg2: memref<8x128xf32, #tpu.memory_space<vmem>>, %arg3: memref<128x128xf32, #tpu.memory_space<vmem>>, %arg4: memref<8x128xf32, #tpu.memory_space<vmem>>) attributes {dimension_semantics = [#tpu.dimension_semantics<arbitrary>], iteration_bounds = array<i64: 1>, scalar_prefetch = 0 : i64, scratch_operands = 0 : i64, tpu.core_type = #tpu.core_type<tc>, window_params = [{pipeline_mode = #tpu.pipeline_mode<synchronous>, transform_indices = @transform_0, window_bounds = array<i64: 8, 8, 128>}, {pipeline_mode = #tpu.pipeline_mode<synchronous>, transform_indices = @transform_1, window_bounds = array<i64: 8, 128>}, {pipeline_mode = #tpu.pipeline_mode<synchronous>, transform_indices = @transform_2, window_bounds = array<i64: 128, 128>}, {pipeline_mode = #tpu.pipeline_mode<synchronous>, transform_indices = @transform_3, window_bounds = array<i64: 8, 128>}]} {
    %c0 = arith.constant 0 : index
    %c0_0 = arith.constant 0 : index
    %0 = vector.load %arg2[%c0, %c0_0] : memref<8x128xf32, #tpu.memory_space<vmem>>, vector<8x128xf32>
    %c0_i32 = arith.constant 0 : i32
    %1 = arith.index_cast %c0_i32 : i32 to index
    %c0_1 = arith.constant 0 : index
    %c0_2 = arith.constant 0 : index
    %2 = vector.load %arg1[%1, %c0_1, %c0_2] : memref<8x8x128xf32, #tpu.memory_space<vmem>>, vector<1x8x128xf32>
    %3 = vector.shape_cast %2 : vector<1x8x128xf32> to vector<8x128xf32>
    %c0_3 = arith.constant 0 : index
    %c0_4 = arith.constant 0 : index
    %4 = vector.load %arg3[%c0_3, %c0_4] : memref<128x128xf32, #tpu.memory_space<vmem>>, vector<128x128xf32>
    %cst = arith.constant dense<0.000000e+00> : vector<8x128xf32>
    %5 = tpu.matmul %0, %4, %cst {dimension_numbers = #tpu.dot_dimension_numbers<[1], [0], [0], [1], [0, 0, 1, 1], [], []>} : vector<8x128xf32>, vector<128x128xf32>, vector<8x128xf32> -> vector<8x128xf32>
    %6 = arith.addf %3, %5 : vector<8x128xf32>
    %7 = math.tanh %6 : vector<8x128xf32>
    %c1_i32 = arith.constant 1 : i32
    %8 = arith.index_cast %c1_i32 : i32 to index
    %c0_5 = arith.constant 0 : index
    %c0_6 = arith.constant 0 : index
    %9 = vector.load %arg1[%8, %c0_5, %c0_6] : memref<8x8x128xf32, #tpu.memory_space<vmem>>, vector<1x8x128xf32>
    %10 = vector.shape_cast %9 : vector<1x8x128xf32> to vector<8x128xf32>
    %c0_7 = arith.constant 0 : index
    %c0_8 = arith.constant 0 : index
    %11 = vector.load %arg3[%c0_7, %c0_8] : memref<128x128xf32, #tpu.memory_space<vmem>>, vector<128x128xf32>
    %cst_9 = arith.constant dense<0.000000e+00> : vector<8x128xf32>
    %12 = tpu.matmul %7, %11, %cst_9 {dimension_numbers = #tpu.dot_dimension_numbers<[1], [0], [0], [1], [0, 0, 1, 1], [], []>} : vector<8x128xf32>, vector<128x128xf32>, vector<8x128xf32> -> vector<8x128xf32>
    %13 = arith.addf %10, %12 : vector<8x128xf32>
    %14 = math.tanh %13 : vector<8x128xf32>
    %c2_i32 = arith.constant 2 : i32
    %15 = arith.index_cast %c2_i32 : i32 to index
    %c0_10 = arith.constant 0 : index
    %c0_11 = arith.constant 0 : index
    %16 = vector.load %arg1[%15, %c0_10, %c0_11] : memref<8x8x128xf32, #tpu.memory_space<vmem>>, vector<1x8x128xf32>
    %17 = vector.shape_cast %16 : vector<1x8x128xf32> to vector<8x128xf32>
    %c0_12 = arith.constant 0 : index
    %c0_13 = arith.constant 0 : index
    %18 = vector.load %arg3[%c0_12, %c0_13] : memref<128x128xf32, #tpu.memory_space<vmem>>, vector<128x128xf32>
    %cst_14 = arith.constant dense<0.000000e+00> : vector<8x128xf32>
    %19 = tpu.matmul %14, %18, %cst_14 {dimension_numbers = #tpu.dot_dimension_numbers<[1], [0], [0], [1], [0, 0, 1, 1], [], []>} : vector<8x128xf32>, vector<128x128xf32>, vector<8x128xf32> -> vector<8x128xf32>
    %20 = arith.addf %17, %19 : vector<8x128xf32>
    %21 = math.tanh %20 : vector<8x128xf32>
    %c3_i32 = arith.constant 3 : i32
    %22 = arith.index_cast %c3_i32 : i32 to index
    %c0_15 = arith.constant 0 : index
    %c0_16 = arith.constant 0 : index
    %23 = vector.load %arg1[%22, %c0_15, %c0_16] : memref<8x8x128xf32, #tpu.memory_space<vmem>>, vector<1x8x128xf32>
    %24 = vector.shape_cast %23 : vector<1x8x128xf32> to vector<8x128xf32>
    %c0_17 = arith.constant 0 : index
    %c0_18 = arith.constant 0 : index
    %25 = vector.load %arg3[%c0_17, %c0_18] : memref<128x128xf32, #tpu.memory_space<vmem>>, vector<128x128xf32>
    %cst_19 = arith.constant dense<0.000000e+00> : vector<8x128xf32>
    %26 = tpu.matmul %21, %25, %cst_19 {dimension_numbers = #tpu.dot_dimension_numbers<[1], [0], [0], [1], [0, 0, 1, 1], [], []>} : vector<8x128xf32>, vector<128x128xf32>, vector<8x128xf32> -> vector<8x128xf32>
    %27 = arith.addf %24, %26 : vector<8x128xf32>
    %28 = math.tanh %27 : vector<8x128xf32>
    %c4_i32 = arith.constant 4 : i32
    %29 = arith.index_cast %c4_i32 : i32 to index
    %c0_20 = arith.constant 0 : index
    %c0_21 = arith.constant 0 : index
    %30 = vector.load %arg1[%29, %c0_20, %c0_21] : memref<8x8x128xf32, #tpu.memory_space<vmem>>, vector<1x8x128xf32>
    %31 = vector.shape_cast %30 : vector<1x8x128xf32> to vector<8x128xf32>
    %c0_22 = arith.constant 0 : index
    %c0_23 = arith.constant 0 : index
    %32 = vector.load %arg3[%c0_22, %c0_23] : memref<128x128xf32, #tpu.memory_space<vmem>>, vector<128x128xf32>
    %cst_24 = arith.constant dense<0.000000e+00> : vector<8x128xf32>
    %33 = tpu.matmul %28, %32, %cst_24 {dimension_numbers = #tpu.dot_dimension_numbers<[1], [0], [0], [1], [0, 0, 1, 1], [], []>} : vector<8x128xf32>, vector<128x128xf32>, vector<8x128xf32> -> vector<8x128xf32>
    %34 = arith.addf %31, %33 : vector<8x128xf32>
    %35 = math.tanh %34 : vector<8x128xf32>
    %c5_i32 = arith.constant 5 : i32
    %36 = arith.index_cast %c5_i32 : i32 to index
    %c0_25 = arith.constant 0 : index
    %c0_26 = arith.constant 0 : index
    %37 = vector.load %arg1[%36, %c0_25, %c0_26] : memref<8x8x128xf32, #tpu.memory_space<vmem>>, vector<1x8x128xf32>
    %38 = vector.shape_cast %37 : vector<1x8x128xf32> to vector<8x128xf32>
    %c0_27 = arith.constant 0 : index
    %c0_28 = arith.constant 0 : index
    %39 = vector.load %arg3[%c0_27, %c0_28] : memref<128x128xf32, #tpu.memory_space<vmem>>, vector<128x128xf32>
    %cst_29 = arith.constant dense<0.000000e+00> : vector<8x128xf32>
    %40 = tpu.matmul %35, %39, %cst_29 {dimension_numbers = #tpu.dot_dimension_numbers<[1], [0], [0], [1], [0, 0, 1, 1], [], []>} : vector<8x128xf32>, vector<128x128xf32>, vector<8x128xf32> -> vector<8x128xf32>
    %41 = arith.addf %38, %40 : vector<8x128xf32>
    %42 = math.tanh %41 : vector<8x128xf32>
    %c6_i32 = arith.constant 6 : i32
    %43 = arith.index_cast %c6_i32 : i32 to index
    %c0_30 = arith.constant 0 : index
    %c0_31 = arith.constant 0 : index
    %44 = vector.load %arg1[%43, %c0_30, %c0_31] : memref<8x8x128xf32, #tpu.memory_space<vmem>>, vector<1x8x128xf32>
    %45 = vector.shape_cast %44 : vector<1x8x128xf32> to vector<8x128xf32>
    %c0_32 = arith.constant 0 : index
    %c0_33 = arith.constant 0 : index
    %46 = vector.load %arg3[%c0_32, %c0_33] : memref<128x128xf32, #tpu.memory_space<vmem>>, vector<128x128xf32>
    %cst_34 = arith.constant dense<0.000000e+00> : vector<8x128xf32>
    %47 = tpu.matmul %42, %46, %cst_34 {dimension_numbers = #tpu.dot_dimension_numbers<[1], [0], [0], [1], [0, 0, 1, 1], [], []>} : vector<8x128xf32>, vector<128x128xf32>, vector<8x128xf32> -> vector<8x128xf32>
    %48 = arith.addf %45, %47 : vector<8x128xf32>
    %49 = math.tanh %48 : vector<8x128xf32>
    %c7_i32 = arith.constant 7 : i32
    %50 = arith.index_cast %c7_i32 : i32 to index
    %c0_35 = arith.constant 0 : index
    %c0_36 = arith.constant 0 : index
    %51 = vector.load %arg1[%50, %c0_35, %c0_36] : memref<8x8x128xf32, #tpu.memory_space<vmem>>, vector<1x8x128xf32>
    %52 = vector.shape_cast %51 : vector<1x8x128xf32> to vector<8x128xf32>
    %c0_37 = arith.constant 0 : index
    %c0_38 = arith.constant 0 : index
    %53 = vector.load %arg3[%c0_37, %c0_38] : memref<128x128xf32, #tpu.memory_space<vmem>>, vector<128x128xf32>
    %cst_39 = arith.constant dense<0.000000e+00> : vector<8x128xf32>
    %54 = tpu.matmul %49, %53, %cst_39 {dimension_numbers = #tpu.dot_dimension_numbers<[1], [0], [0], [1], [0, 0, 1, 1], [], []>} : vector<8x128xf32>, vector<128x128xf32>, vector<8x128xf32> -> vector<8x128xf32>
    %55 = arith.addf %52, %54 : vector<8x128xf32>
    %56 = math.tanh %55 : vector<8x128xf32>
    %c8_i32 = arith.constant 8 : i32
    %c0_40 = arith.constant 0 : index
    %c0_41 = arith.constant 0 : index
    %57 = vector.load %arg4[%c0_40, %c0_41] : memref<8x128xf32, #tpu.memory_space<vmem>>, vector<8x128xf32>
    tpu.vector_store %arg4[%c0_40, %c0_41], %56 {strides = array<i32>} : memref<8x128xf32, #tpu.memory_space<vmem>>, vector<8x128xf32>,
    return
  }
  func.func @transform_0(%arg0: i32) -> (i32, i32, i32) {
    %c0_i32 = arith.constant 0 : i32
    %c0_i32_0 = arith.constant 0 : i32
    %c0_i32_1 = arith.constant 0 : i32
    %c0_i32_2 = arith.constant 0 : i32
    return %c0_i32, %c0_i32_0, %c0_i32_1 : i32, i32, i32
  }
  func.func @transform_1(%arg0: i32) -> (i32, i32) {
    %c0_i32 = arith.constant 0 : i32
    %c0_i32_0 = arith.constant 0 : i32
    %c0_i32_1 = arith.constant 0 : i32
    return %c0_i32, %c0_i32_0 : i32, i32
  }
  func.func @transform_2(%arg0: i32) -> (i32, i32) {
    %c0_i32 = arith.constant 0 : i32
    %c0_i32_0 = arith.constant 0 : i32
    %c0_i32_1 = arith.constant 0 : i32
    return %c0_i32, %c0_i32_0 : i32, i32
  }
  func.func @transform_3(%arg0: i32) -> (i32, i32) {
    %c0_i32 = arith.constant 0 : i32
    %c0_i32_0 = arith.constant 0 : i32
    %c0_i32_1 = arith.constant 0 : i32
    return %c0_i32, %c0_i32_0 : i32, i32
  }
}

</mosaic_0001>

<llo_original>
// kernel: tpu_custom_call.1
$region0: #{tpu_custom_call.1}
  #allocation0 [shape = 'u32[]', space=smem, size = 0x4, offset = 0x4, fixed_abs, tag = 'smem constant byte address 0x4 - core index']
  #allocation1 [shape = 'u32[144,128]{1,0:T(1,128)}', space=vmem, size = 0x12000, scoped, tag = 'internal scratch']
  %s0 = inlined_call_operand.hbm [shape: f32[8,8,128], index: 0, kind: input, shape index: {}]
  %s1 = inlined_call_operand.hbm [shape: f32[8,128], index: 1, kind: input, shape index: {}]
  %s2 = inlined_call_operand.hbm [shape: f32[128,128], index: 2, kind: input, shape index: {}]
  %s3 = inlined_call_operand.hbm [shape: f32[8,128], index: 3, kind: output, shape index: {}]
  %s4 = sld [smem:[#allocation0]]
  $region34: #{tpu_custom_call.1} parent=0
    _
  %s6 = ssub.s32 1, %s4
  %s7 = scalar_select 0, %s6, %s4
  $region1: #{tpu_custom_call.1} parent=0
    #allocation2 [shape = 'u8[32768]{0}', space=vmem, size = 0x8000, scoped, tag = 'input window, operand 0, single buffered']
    #allocation3 [shape = 's32[1]{0}', space=sflag, size = 0x4, scoped, tag = 'scoped memory for tpu_custom_call.1']
    #allocation4 [shape = 's32[1]{0}', space=sflag, size = 0x4, scoped, tag = 'scoped memory for tpu_custom_call.1']
    #allocation5 [shape = 'u8[4096]{0}', space=vmem, size = 0x1000, scoped, tag = 'input window, operand 1, single buffered']
    #allocation6 [shape = 's32[1]{0}', space=sflag, size = 0x4, scoped, tag = 'scoped memory for tpu_custom_call.1']
    #allocation7 [shape = 'u8[65536]{0}', space=vmem, size = 0x10000, scoped, tag = 'input window, operand 2, single buffered']
    #allocation8 [shape = 'u8[4096]{0}', space=vmem, size = 0x1000, scoped, tag = 'output window, operand 0, single buffered']
    %8 = vsyncpa [#allocation3], 0
    %9 = vsyncpa [#allocation6], 0
    %10 = vsyncpa [#allocation4], 0
    // Predicated region
    $region2: #{tpu_custom_call.1} parent=1 // pred_check
      _
    $region3: #{tpu_custom_call.1} parent=1 // pred_check_branch
      %12 = sbr.rel (0) target = $region5
    $region4: #{tpu_custom_call.1} parent=1 // pred_region
      %s14 = ssub.s32 1024, 1024
      %15 = vsyncadd [#allocation3], %s14
      %s16 = sshll.u32 [#allocation2], 4
      %s17 = int_to_ptr.vmem [resolvable:$true] %s16
      %22 = dma.hbm_to_vmem [thread:$0]  %s0, 1024, %s17, [#allocation3], 128, 128, 8
    $region5: #{tpu_custom_call.1} parent=1 // pred_fallthru
      _
    // Predicated region
    $region6: #{tpu_custom_call.1} parent=1 // pred_check
      _
    $region7: #{tpu_custom_call.1} parent=1 // pred_check_branch
      %24 = sbr.rel (0) target = $region9
    $region8: #{tpu_custom_call.1} parent=1 // pred_region
      %s26 = ssub.s32 128, 128
      %27 = vsyncadd [#allocation6], %s26
      %s29 = sshll.u32 [#allocation5], 4
      %s30 = int_to_ptr.vmem [resolvable:$true] %s29
      %32 = dma.hbm_to_vmem [thread:$0]  %s1, 128, %s30, [#allocation6]
    $region9: #{tpu_custom_call.1} parent=1 // pred_fallthru
      _
    // Predicated region
    $region10: #{tpu_custom_call.1} parent=1 // pred_check
      _
    $region11: #{tpu_custom_call.1} parent=1 // pred_check_branch
      %34 = sbr.rel (0) target = $region13
    $region12: #{tpu_custom_call.1} parent=1 // pred_region
      %s36 = ssub.s32 2048, 2048
      %37 = vsyncadd [#allocation6], %s36
      %s38 = sshll.u32 [#allocation7], 4
      %s39 = int_to_ptr.vmem [resolvable:$true] %s38
      %44 = dma.hbm_to_vmem [thread:$0]  %s2, 2048, %s39, [#allocation6], 128, 128, 8
    $region13: #{tpu_custom_call.1} parent=1 // pred_fallthru
      _
    // Predicated region
    $region14: #{tpu_custom_call.1} parent=1 // pred_check
      _
    $region15: #{tpu_custom_call.1} parent=1 // pred_check_branch
      %46 = sbr.rel (0) target = $region17
    $region16: #{tpu_custom_call.1} parent=1 // pred_region
      %47 = dma.done [#allocation3], 1024
    $region17: #{tpu_custom_call.1} parent=1 // pred_fallthru
      _
    // Predicated region
    $region18: #{tpu_custom_call.1} parent=1 // pred_check
      _
    $region19: #{tpu_custom_call.1} parent=1 // pred_check_branch
      %49 = sbr.rel (0) target = $region21
    $region20: #{tpu_custom_call.1} parent=1 // pred_region
      %50 = dma.done [#allocation6], 128
    $region21: #{tpu_custom_call.1} parent=1 // pred_fallthru
      _
    // Predicated region
    $region22: #{tpu_custom_call.1} parent=1 // pred_check
      _
    $region23: #{tpu_custom_call.1} parent=1 // pred_check_branch
      %52 = sbr.rel (0) target = $region25
    $region24: #{tpu_custom_call.1} parent=1 // pred_region
      %53 = dma.done [#allocation6], 2048
    $region25: #{tpu_custom_call.1} parent=1 // pred_fallthru
      _
    %v54 = vld [vmem:[#allocation5] sm:$0xff]
    %v55 = vld [vmem:[#allocation2] sm:$0xff]
    %v56 = vld [vmem:[#allocation7] sm:$0xff]
    %v57 = vld [vmem:[#allocation7 + $0x8] sm:$0xff]
    %v58 = vld [vmem:[#allocation7 + $0x10] sm:$0xff]
    %v59 = vld [vmem:[#allocation7 + $0x18] sm:$0xff]
    %v60 = vld [vmem:[#allocation7 + $0x20] sm:$0xff]
    %v61 = vld [vmem:[#allocation7 + $0x28] sm:$0xff]
    %v62 = vld [vmem:[#allocation7 + $0x30] sm:$0xff]
    %v63 = vld [vmem:[#allocation7 + $0x38] sm:$0xff]
    %v64 = vld [vmem:[#allocation7 + $0x40] sm:$0xff]
    %v65 = vld [vmem:[#allocation7 + $0x48] sm:$0xff]
    %v66 = vld [vmem:[#allocation7 + $0x50] sm:$0xff]
    %v67 = vld [vmem:[#allocation7 + $0x58] sm:$0xff]
    %v68 = vld [vmem:[#allocation7 + $0x60] sm:$0xff]
    %v69 = vld [vmem:[#allocation7 + $0x68] sm:$0xff]
    %v70 = vld [vmem:[#allocation7 + $0x70] sm:$0xff]
    %v71 = vld [vmem:[#allocation7 + $0x78] sm:$0xff]
    %72 = vmatprep.subr.mxu0 0.0
    %73 = vmatpush1.msra.mxu0 %v56
    %74 = vmatprep.subr.mxu0 0.0
    %75 = vmatpush1.msra.mxu0 %v57
    %76 = vmatprep.subr.mxu0 0.0
    %77 = vmatpush1.msra.mxu0 %v58
    %78 = vmatprep.subr.mxu0 0.0
    %79 = vmatpush1.msra.mxu0 %v59
    %80 = vmatprep.subr.mxu0 0.0
    %81 = vmatpush1.msra.mxu0 %v60
    %82 = vmatprep.subr.mxu0 0.0
    %83 = vmatpush1.msra.mxu0 %v61
    %84 = vmatprep.subr.mxu0 0.0
    %85 = vmatpush1.msra.mxu0 %v62
    %86 = vmatprep.subr.mxu0 0.0
    %87 = vmatpush1.msra.mxu0 %v63
    %88 = vmatprep.subr.mxu0 0.0
    %89 = vmatpush1.msra.mxu0 %v64
    %90 = vmatprep.subr.mxu0 0.0
    %91 = vmatpush1.msra.mxu0 %v65
    %92 = vmatprep.subr.mxu0 0.0
    %93 = vmatpush1.msra.mxu0 %v66
    %94 = vmatprep.subr.mxu0 0.0
    %95 = vmatpush1.msra.mxu0 %v67
    %96 = vmatprep.subr.mxu0 0.0
    %97 = vmatpush1.msra.mxu0 %v68
    %98 = vmatprep.subr.mxu0 0.0
    %99 = vmatpush1.msra.mxu0 %v69
    %100 = vmatprep.subr.mxu0 0.0
    %101 = vmatpush1.msra.mxu0 %v70
    %102 = vmatprep.subr.mxu0 0.0
    %103 = vmatpush1.msra.mxu0 %v71
    %104 = vmatprep.subr.mxu0 0.0
    %105 = vmatpush1.msra.mxu0 0.0
    %106 = vmatprep.subr.mxu0 0.0
    %107 = vmatpush1.msra.mxu0 0.0
    %108 = vmatprep.subr.mxu0 0.0
    %109 = vmatpush1.msra.mxu0 0.0
    %110 = vmatprep.subr.mxu0 0.0
    %111 = vmatpush1.msra.mxu0 0.0
    %112 = vmatprep.subr.mxu0 0.0
    %113 = vmatpush1.msra.mxu0 0.0
    %114 = vmatprep.subr.mxu0 0.0
    %115 = vmatpush1.msra.mxu0 0.0
    %116 = vmatprep.subr.mxu0 0.0
    %117 = vmatpush1.msra.mxu0 0.0
    %118 = vmatprep.subr.mxu0 0.0
    %119 = vmatpush1.msra.mxu0 0.0
    %120 = vmatprep.subr.mxu0 0.0
    %121 = vmatpush1.msra.mxu0 0.0
    %122 = vmatprep.subr.mxu0 0.0
    %123 = vmatpush1.msra.mxu0 0.0
    %124 = vmatprep.subr.mxu0 0.0
    %125 = vmatpush1.msra.mxu0 0.0
    %126 = vmatprep.subr.mxu0 0.0
    %127 = vmatpush1.msra.mxu0 0.0
    %128 = vmatprep.subr.mxu0 0.0
    %129 = vmatpush1.msra.mxu0 0.0
    %130 = vmatprep.subr.mxu0 0.0
    %131 = vmatpush1.msra.mxu0 0.0
    %132 = vmatprep.subr.mxu0 0.0
    %133 = vmatpush1.msra.mxu0 0.0
    %134 = vmatprep.subr.mxu0 0.0
    %135 = vmatpush1.msra.mxu0 0.0
    %136 = vmatprep.mubr.f32.mxu0 0.0
    %137 = vmatmul.mubr.f32.gmra.mrb[0].mxu0 %v54
    %v138 = vpop.f32.mrb[0].mxu0
    %v139 = vadd.f32 0.0, %v138
    %v140 = vpop.f32.mrb[0].mxu0
    %141 = vdwg.mxu0
    %v142 = vadd.f32 %v55, %v139
    %v143 = vtanh.pop %v142
    %s144 = scalar_lea.vmem [#allocation2], 8
    %v145 = vld [vmem:[%s144] sm:$0xff]
    %146 = vmatprep.subr.mxu0 0.0
    %147 = vmatpush1.msra.mxu0 %v56
    %148 = vmatprep.subr.mxu0 0.0
    %149 = vmatpush1.msra.mxu0 %v57
    %150 = vmatprep.subr.mxu0 0.0
    %151 = vmatpush1.msra.mxu0 %v58
    %152 = vmatprep.subr.mxu0 0.0
    %153 = vmatpush1.msra.mxu0 %v59
    %154 = vmatprep.subr.mxu0 0.0
    %155 = vmatpush1.msra.mxu0 %v60
    %156 = vmatprep.subr.mxu0 0.0
    %157 = vmatpush1.msra.mxu0 %v61
    %158 = vmatprep.subr.mxu0 0.0
    %159 = vmatpush1.msra.mxu0 %v62
    %160 = vmatprep.subr.mxu0 0.0
    %161 = vmatpush1.msra.mxu0 %v63
    %162 = vmatprep.subr.mxu0 0.0
    %163 = vmatpush1.msra.mxu0 %v64
    %164 = vmatprep.subr.mxu0 0.0
    %165 = vmatpush1.msra.mxu0 %v65
    %166 = vmatprep.subr.mxu0 0.0
    %167 = vmatpush1.msra.mxu0 %v66
    %168 = vmatprep.subr.mxu0 0.0
    %169 = vmatpush1.msra.mxu0 %v67
    %170 = vmatprep.subr.mxu0 0.0
    %171 = vmatpush1.msra.mxu0 %v68
    %172 = vmatprep.subr.mxu0 0.0
    %173 = vmatpush1.msra.mxu0 %v69
    %174 = vmatprep.subr.mxu0 0.0
    %175 = vmatpush1.msra.mxu0 %v70
    %176 = vmatprep.subr.mxu0 0.0
    %177 = vmatpush1.msra.mxu0 %v71
    %178 = vmatprep.subr.mxu0 0.0
    %179 = vmatpush1.msra.mxu0 0.0
    %180 = vmatprep.subr.mxu0 0.0
    %181 = vmatpush1.msra.mxu0 0.0
    %182 = vmatprep.subr.mxu0 0.0
    %183 = vmatpush1.msra.mxu0 0.0
    %184 = vmatprep.subr.mxu0 0.0
    %185 = vmatpush1.msra.mxu0 0.0
    %186 = vmatprep.subr.mxu0 0.0
    %187 = vmatpush1.msra.mxu0 0.0
    %188 = vmatprep.subr.mxu0 0.0
    %189 = vmatpush1.msra.mxu0 0.0
    %190 = vmatprep.subr.mxu0 0.0
    %191 = vmatpush1.msra.mxu0 0.0
    %192 = vmatprep.subr.mxu0 0.0
    %193 = vmatpush1.msra.mxu0 0.0
    %194 = vmatprep.subr.mxu0 0.0
    %195 = vmatpush1.msra.mxu0 0.0
    %196 = vmatprep.subr.mxu0 0.0
    %197 = vmatpush1.msra.mxu0 0.0
    %198 = vmatprep.subr.mxu0 0.0
    %199 = vmatpush1.msra.mxu0 0.0
    %200 = vmatprep.subr.mxu0 0.0
    %201 = vmatpush1.msra.mxu0 0.0
    %202 = vmatprep.subr.mxu0 0.0
    %203 = vmatpush1.msra.mxu0 0.0
    %204 = vmatprep.subr.mxu0 0.0
    %205 = vmatpush1.msra.mxu0 0.0
    %206 = vmatprep.subr.mxu0 0.0
    %207 = vmatpush1.msra.mxu0 0.0
    %208 = vmatprep.subr.mxu0 0.0
    %209 = vmatpush1.msra.mxu0 0.0
    %210 = vmatprep.mubr.f32.mxu0 0.0
    %211 = vmatmul.mubr.f32.gmra.mrb[0].mxu0 %v143
    %v212 = vpop.f32.mrb[0].mxu0
    %v213 = vadd.f32 0.0, %v212
    %v214 = vpop.f32.mrb[0].mxu0
    %215 = vdwg.mxu0
    %v216 = vadd.f32 %v145, %v213
    %v217 = vtanh.pop %v216
    %s218 = scalar_lea.vmem [#allocation2], 16
    %v219 = vld [vmem:[%s218] sm:$0xff]
    %220 = vmatprep.subr.mxu0 0.0
    %221 = vmatpush1.msra.mxu0 %v56
    %222 = vmatprep.subr.mxu0 0.0
    %223 = vmatpush1.msra.mxu0 %v57
    %224 = vmatprep.subr.mxu0 0.0
    %225 = vmatpush1.msra.mxu0 %v58
    %226 = vmatprep.subr.mxu0 0.0
    %227 = vmatpush1.msra.mxu0 %v59
    %228 = vmatprep.subr.mxu0 0.0
    %229 = vmatpush1.msra.mxu0 %v60
    %230 = vmatprep.subr.mxu0 0.0
    %231 = vmatpush1.msra.mxu0 %v61
    %232 = vmatprep.subr.mxu0 0.0
    %233 = vmatpush1.msra.mxu0 %v62
    %234 = vmatprep.subr.mxu0 0.0
    %235 = vmatpush1.msra.mxu0 %v63
    %236 = vmatprep.subr.mxu0 0.0
    %237 = vmatpush1.msra.mxu0 %v64
    %238 = vmatprep.subr.mxu0 0.0
    %239 = vmatpush1.msra.mxu0 %v65
    %240 = vmatprep.subr.mxu0 0.0
    %241 = vmatpush1.msra.mxu0 %v66
    %242 = vmatprep.subr.mxu0 0.0
    %243 = vmatpush1.msra.mxu0 %v67
    %244 = vmatprep.subr.mxu0 0.0
    %245 = vmatpush1.msra.mxu0 %v68
    %246 = vmatprep.subr.mxu0 0.0
    %247 = vmatpush1.msra.mxu0 %v69
    %248 = vmatprep.subr.mxu0 0.0
    %249 = vmatpush1.msra.mxu0 %v70
    %250 = vmatprep.subr.mxu0 0.0
    %251 = vmatpush1.msra.mxu0 %v71
    %252 = vmatprep.subr.mxu0 0.0
    %253 = vmatpush1.msra.mxu0 0.0
    %254 = vmatprep.subr.mxu0 0.0
    %255 = vmatpush1.msra.mxu0 0.0
    %256 = vmatprep.subr.mxu0 0.0
    %257 = vmatpush1.msra.mxu0 0.0
    %258 = vmatprep.subr.mxu0 0.0
    %259 = vmatpush1.msra.mxu0 0.0
    %260 = vmatprep.subr.mxu0 0.0
    %261 = vmatpush1.msra.mxu0 0.0
    %262 = vmatprep.subr.mxu0 0.0
    %263 = vmatpush1.msra.mxu0 0.0
    %264 = vmatprep.subr.mxu0 0.0
    %265 = vmatpush1.msra.mxu0 0.0
    %266 = vmatprep.subr.mxu0 0.0
    %267 = vmatpush1.msra.mxu0 0.0
    %268 = vmatprep.subr.mxu0 0.0
    %269 = vmatpush1.msra.mxu0 0.0
    %270 = vmatprep.subr.mxu0 0.0
    %271 = vmatpush1.msra.mxu0 0.0
    %272 = vmatprep.subr.mxu0 0.0
    %273 = vmatpush1.msra.mxu0 0.0
    %274 = vmatprep.subr.mxu0 0.0
    %275 = vmatpush1.msra.mxu0 0.0
    %276 = vmatprep.subr.mxu0 0.0
    %277 = vmatpush1.msra.mxu0 0.0
    %278 = vmatprep.subr.mxu0 0.0
    %279 = vmatpush1.msra.mxu0 0.0
    %280 = vmatprep.subr.mxu0 0.0
    %281 = vmatpush1.msra.mxu0 0.0
    %282 = vmatprep.subr.mxu0 0.0
    %283 = vmatpush1.msra.mxu0 0.0
    %284 = vmatprep.mubr.f32.mxu0 0.0
    %285 = vmatmul.mubr.f32.gmra.mrb[0].mxu0 %v217
    %v286 = vpop.f32.mrb[0].mxu0
    %v287 = vadd.f32 0.0, %v286
    %v288 = vpop.f32.mrb[0].mxu0
    %289 = vdwg.mxu0
    %v290 = vadd.f32 %v219, %v287
    %v291 = vtanh.pop %v290
    %s292 = scalar_lea.vmem [#allocation2], 24
    %v293 = vld [vmem:[%s292] sm:$0xff]
    %294 = vmatprep.subr.mxu0 0.0
    %295 = vmatpush1.msra.mxu0 %v56
    %296 = vmatprep.subr.mxu0 0.0
    %297 = vmatpush1.msra.mxu0 %v57
    %298 = vmatprep.subr.mxu0 0.0
    %299 = vmatpush1.msra.mxu0 %v58
    %300 = vmatprep.subr.mxu0 0.0
    %301 = vmatpush1.msra.mxu0 %v59
    %302 = vmatprep.subr.mxu0 0.0
    %303 = vmatpush1.msra.mxu0 %v60
    %304 = vmatprep.subr.mxu0 0.0
    %305 = vmatpush1.msra.mxu0 %v61
    %306 = vmatprep.subr.mxu0 0.0
    %307 = vmatpush1.msra.mxu0 %v62
    %308 = vmatprep.subr.mxu0 0.0
    %309 = vmatpush1.msra.mxu0 %v63
    %310 = vmatprep.subr.mxu0 0.0
    %311 = vmatpush1.msra.mxu0 %v64
    %312 = vmatprep.subr.mxu0 0.0
    %313 = vmatpush1.msra.mxu0 %v65
    %314 = vmatprep.subr.mxu0 0.0
    %315 = vmatpush1.msra.mxu0 %v66
    %316 = vmatprep.subr.mxu0 0.0
    %317 = vmatpush1.msra.mxu0 %v67
    %318 = vmatprep.subr.mxu0 0.0
    %319 = vmatpush1.msra.mxu0 %v68
    %320 = vmatprep.subr.mxu0 0.0
    %321 = vmatpush1.msra.mxu0 %v69
    %322 = vmatprep.subr.mxu0 0.0
    %323 = vmatpush1.msra.mxu0 %v70
    %324 = vmatprep.subr.mxu0 0.0
    %325 = vmatpush1.msra.mxu0 %v71
    %326 = vmatprep.subr.mxu0 0.0
    %327 = vmatpush1.msra.mxu0 0.0
    %328 = vmatprep.subr.mxu0 0.0
    %329 = vmatpush1.msra.mxu0 0.0
    %330 = vmatprep.subr.mxu0 0.0
    %331 = vmatpush1.msra.mxu0 0.0
    %332 = vmatprep.subr.mxu0 0.0
    %333 = vmatpush1.msra.mxu0 0.0
    %334 = vmatprep.subr.mxu0 0.0
    %335 = vmatpush1.msra.mxu0 0.0
    %336 = vmatprep.subr.mxu0 0.0
    %337 = vmatpush1.msra.mxu0 0.0
    %338 = vmatprep.subr.mxu0 0.0
    %339 = vmatpush1.msra.mxu0 0.0
    %340 = vmatprep.subr.mxu0 0.0
    %341 = vmatpush1.msra.mxu0 0.0
    %342 = vmatprep.subr.mxu0 0.0
    %343 = vmatpush1.msra.mxu0 0.0
    %344 = vmatprep.subr.mxu0 0.0
    %345 = vmatpush1.msra.mxu0 0.0
    %346 = vmatprep.subr.mxu0 0.0
    %347 = vmatpush1.msra.mxu0 0.0
    %348 = vmatprep.subr.mxu0 0.0
    %349 = vmatpush1.msra.mxu0 0.0
    %350 = vmatprep.subr.mxu0 0.0
    %351 = vmatpush1.msra.mxu0 0.0
    %352 = vmatprep.subr.mxu0 0.0
    %353 = vmatpush1.msra.mxu0 0.0
    %354 = vmatprep.subr.mxu0 0.0
    %355 = vmatpush1.msra.mxu0 0.0
    %356 = vmatprep.subr.mxu0 0.0
    %357 = vmatpush1.msra.mxu0 0.0
    %358 = vmatprep.mubr.f32.mxu0 0.0
    %359 = vmatmul.mubr.f32.gmra.mrb[0].mxu0 %v291
    %v360 = vpop.f32.mrb[0].mxu0
    %v361 = vadd.f32 0.0, %v360
    %v362 = vpop.f32.mrb[0].mxu0
    %363 = vdwg.mxu0
    %v364 = vadd.f32 %v293, %v361
    %v365 = vtanh.pop %v364
    %s366 = scalar_lea.vmem [#allocation2], 32
    %v367 = vld [vmem:[%s366] sm:$0xff]
    %368 = vmatprep.subr.mxu0 0.0
    %369 = vmatpush1.msra.mxu0 %v56
    %370 = vmatprep.subr.mxu0 0.0
    %371 = vmatpush1.msra.mxu0 %v57
    %372 = vmatprep.subr.mxu0 0.0
    %373 = vmatpush1.msra.mxu0 %v58
    %374 = vmatprep.subr.mxu0 0.0
    %375 = vmatpush1.msra.mxu0 %v59
    %376 = vmatprep.subr.mxu0 0.0
    %377 = vmatpush1.msra.mxu0 %v60
    %378 = vmatprep.subr.mxu0 0.0
    %379 = vmatpush1.msra.mxu0 %v61
    %380 = vmatprep.subr.mxu0 0.0
    %381 = vmatpush1.msra.mxu0 %v62
    %382 = vmatprep.subr.mxu0 0.0
    %383 = vmatpush1.msra.mxu0 %v63
    %384 = vmatprep.subr.mxu0 0.0
    %385 = vmatpush1.msra.mxu0 %v64
    %386 = vmatprep.subr.mxu0 0.0
    %387 = vmatpush1.msra.mxu0 %v65
    %388 = vmatprep.subr.mxu0 0.0
    %389 = vmatpush1.msra.mxu0 %v66
    %390 = vmatprep.subr.mxu0 0.0
    %391 = vmatpush1.msra.mxu0 %v67
    %392 = vmatprep.subr.mxu0 0.0
    %393 = vmatpush1.msra.mxu0 %v68
    %394 = vmatprep.subr.mxu0 0.0
    %395 = vmatpush1.msra.mxu0 %v69
    %396 = vmatprep.subr.mxu0 0.0
    %397 = vmatpush1.msra.mxu0 %v70
    %398 = vmatprep.subr.mxu0 0.0
    %399 = vmatpush1.msra.mxu0 %v71
    %400 = vmatprep.subr.mxu0 0.0
    %401 = vmatpush1.msra.mxu0 0.0
    %402 = vmatprep.subr.mxu0 0.0
    %403 = vmatpush1.msra.mxu0 0.0
    %404 = vmatprep.subr.mxu0 0.0
    %405 = vmatpush1.msra.mxu0 0.0
    %406 = vmatprep.subr.mxu0 0.0
    %407 = vmatpush1.msra.mxu0 0.0
    %408 = vmatprep.subr.mxu0 0.0
    %409 = vmatpush1.msra.mxu0 0.0
    %410 = vmatprep.subr.mxu0 0.0
    %411 = vmatpush1.msra.mxu0 0.0
    %412 = vmatprep.subr.mxu0 0.0
    %413 = vmatpush1.msra.mxu0 0.0
    %414 = vmatprep.subr.mxu0 0.0
    %415 = vmatpush1.msra.mxu0 0.0
    %416 = vmatprep.subr.mxu0 0.0
    %417 = vmatpush1.msra.mxu0 0.0
    %418 = vmatprep.subr.mxu0 0.0
    %419 = vmatpush1.msra.mxu0 0.0
    %420 = vmatprep.subr.mxu0 0.0
    %421 = vmatpush1.msra.mxu0 0.0
    %422 = vmatprep.subr.mxu0 0.0
    %423 = vmatpush1.msra.mxu0 0.0
    %424 = vmatprep.subr.mxu0 0.0
    %425 = vmatpush1.msra.mxu0 0.0
    %426 = vmatprep.subr.mxu0 0.0
    %427 = vmatpush1.msra.mxu0 0.0
    %428 = vmatprep.subr.mxu0 0.0
    %429 = vmatpush1.msra.mxu0 0.0
    %430 = vmatprep.subr.mxu0 0.0
    %431 = vmatpush1.msra.mxu0 0.0
    %432 = vmatprep.mubr.f32.mxu0 0.0
    %433 = vmatmul.mubr.f32.gmra.mrb[0].mxu0 %v365
    %v434 = vpop.f32.mrb[0].mxu0
    %v435 = vadd.f32 0.0, %v434
    %v436 = vpop.f32.mrb[0].mxu0
    %437 = vdwg.mxu0
    %v438 = vadd.f32 %v367, %v435
    %v439 = vtanh.pop %v438
    %s440 = scalar_lea.vmem [#allocation2], 40
    %v441 = vld [vmem:[%s440] sm:$0xff]
    %442 = vmatprep.subr.mxu0 0.0
    %443 = vmatpush1.msra.mxu0 %v56
    %444 = vmatprep.subr.mxu0 0.0
    %445 = vmatpush1.msra.mxu0 %v57
    %446 = vmatprep.subr.mxu0 0.0
    %447 = vmatpush1.msra.mxu0 %v58
    %448 = vmatprep.subr.mxu0 0.0
    %449 = vmatpush1.msra.mxu0 %v59
    %450 = vmatprep.subr.mxu0 0.0
    %451 = vmatpush1.msra.mxu0 %v60
    %452 = vmatprep.subr.mxu0 0.0
    %453 = vmatpush1.msra.mxu0 %v61
    %454 = vmatprep.subr.mxu0 0.0
    %455 = vmatpush1.msra.mxu0 %v62
    %456 = vmatprep.subr.mxu0 0.0
    %457 = vmatpush1.msra.mxu0 %v63
    %458 = vmatprep.subr.mxu0 0.0
    %459 = vmatpush1.msra.mxu0 %v64
    %460 = vmatprep.subr.mxu0 0.0
    %461 = vmatpush1.msra.mxu0 %v65
    %462 = vmatprep.subr.mxu0 0.0
    %463 = vmatpush1.msra.mxu0 %v66
    %464 = vmatprep.subr.mxu0 0.0
    %465 = vmatpush1.msra.mxu0 %v67
    %466 = vmatprep.subr.mxu0 0.0
    %467 = vmatpush1.msra.mxu0 %v68
    %468 = vmatprep.subr.mxu0 0.0
    %469 = vmatpush1.msra.mxu0 %v69
    %470 = vmatprep.subr.mxu0 0.0
    %471 = vmatpush1.msra.mxu0 %v70
    %472 = vmatprep.subr.mxu0 0.0
    %473 = vmatpush1.msra.mxu0 %v71
    %474 = vmatprep.subr.mxu0 0.0
    %475 = vmatpush1.msra.mxu0 0.0
    %476 = vmatprep.subr.mxu0 0.0
    %477 = vmatpush1.msra.mxu0 0.0
    %478 = vmatprep.subr.mxu0 0.0
    %479 = vmatpush1.msra.mxu0 0.0
    %480 = vmatprep.subr.mxu0 0.0
    %481 = vmatpush1.msra.mxu0 0.0
    %482 = vmatprep.subr.mxu0 0.0
    %483 = vmatpush1.msra.mxu0 0.0
    %484 = vmatprep.subr.mxu0 0.0
    %485 = vmatpush1.msra.mxu0 0.0
    %486 = vmatprep.subr.mxu0 0.0
    %487 = vmatpush1.msra.mxu0 0.0
    %488 = vmatprep.subr.mxu0 0.0
    %489 = vmatpush1.msra.mxu0 0.0
    %490 = vmatprep.subr.mxu0 0.0
    %491 = vmatpush1.msra.mxu0 0.0
    %492 = vmatprep.subr.mxu0 0.0
    %493 = vmatpush1.msra.mxu0 0.0
    %494 = vmatprep.subr.mxu0 0.0
    %495 = vmatpush1.msra.mxu0 0.0
    %496 = vmatprep.subr.mxu0 0.0
    %497 = vmatpush1.msra.mxu0 0.0
    %498 = vmatprep.subr.mxu0 0.0
    %499 = vmatpush1.msra.mxu0 0.0
    %500 = vmatprep.subr.mxu0 0.0
    %501 = vmatpush1.msra.mxu0 0.0
    %502 = vmatprep.subr.mxu0 0.0
    %503 = vmatpush1.msra.mxu0 0.0
    %504 = vmatprep.subr.mxu0 0.0
    %505 = vmatpush1.msra.mxu0 0.0
    %506 = vmatprep.mubr.f32.mxu0 0.0
    %507 = vmatmul.mubr.f32.gmra.mrb[0].mxu0 %v439
    %v508 = vpop.f32.mrb[0].mxu0
    %v509 = vadd.f32 0.0, %v508
    %v510 = vpop.f32.mrb[0].mxu0
    %511 = vdwg.mxu0
    %v512 = vadd.f32 %v441, %v509
    %v513 = vtanh.pop %v512
    %s514 = scalar_lea.vmem [#allocation2], 48
    %v515 = vld [vmem:[%s514] sm:$0xff]
    %516 = vmatprep.subr.mxu0 0.0
    %517 = vmatpush1.msra.mxu0 %v56
    %518 = vmatprep.subr.mxu0 0.0
    %519 = vmatpush1.msra.mxu0 %v57
    %520 = vmatprep.subr.mxu0 0.0
    %521 = vmatpush1.msra.mxu0 %v58
    %522 = vmatprep.subr.mxu0 0.0
    %523 = vmatpush1.msra.mxu0 %v59
    %524 = vmatprep.subr.mxu0 0.0
    %525 = vmatpush1.msra.mxu0 %v60
    %526 = vmatprep.subr.mxu0 0.0
    %527 = vmatpush1.msra.mxu0 %v61
    %528 = vmatprep.subr.mxu0 0.0
    %529 = vmatpush1.msra.mxu0 %v62
    %530 = vmatprep.subr.mxu0 0.0
    %531 = vmatpush1.msra.mxu0 %v63
    %532 = vmatprep.subr.mxu0 0.0
    %533 = vmatpush1.msra.mxu0 %v64
    %534 = vmatprep.subr.mxu0 0.0
    %535 = vmatpush1.msra.mxu0 %v65
    %536 = vmatprep.subr.mxu0 0.0
    %537 = vmatpush1.msra.mxu0 %v66
    %538 = vmatprep.subr.mxu0 0.0
    %539 = vmatpush1.msra.mxu0 %v67
    %540 = vmatprep.subr.mxu0 0.0
    %541 = vmatpush1.msra.mxu0 %v68
    %542 = vmatprep.subr.mxu0 0.0
    %543 = vmatpush1.msra.mxu0 %v69
    %544 = vmatprep.subr.mxu0 0.0
    %545 = vmatpush1.msra.mxu0 %v70
    %546 = vmatprep.subr.mxu0 0.0
    %547 = vmatpush1.msra.mxu0 %v71
    %548 = vmatprep.subr.mxu0 0.0
    %549 = vmatpush1.msra.mxu0 0.0
    %550 = vmatprep.subr.mxu0 0.0
    %551 = vmatpush1.msra.mxu0 0.0
    %552 = vmatprep.subr.mxu0 0.0
    %553 = vmatpush1.msra.mxu0 0.0
    %554 = vmatprep.subr.mxu0 0.0
    %555 = vmatpush1.msra.mxu0 0.0
    %556 = vmatprep.subr.mxu0 0.0
    %557 = vmatpush1.msra.mxu0 0.0
    %558 = vmatprep.subr.mxu0 0.0
    %559 = vmatpush1.msra.mxu0 0.0
    %560 = vmatprep.subr.mxu0 0.0
    %561 = vmatpush1.msra.mxu0 0.0
    %562 = vmatprep.subr.mxu0 0.0
    %563 = vmatpush1.msra.mxu0 0.0
    %564 = vmatprep.subr.mxu0 0.0
    %565 = vmatpush1.msra.mxu0 0.0
    %566 = vmatprep.subr.mxu0 0.0
    %567 = vmatpush1.msra.mxu0 0.0
    %568 = vmatprep.subr.mxu0 0.0
    %569 = vmatpush1.msra.mxu0 0.0
    %570 = vmatprep.subr.mxu0 0.0
    %571 = vmatpush1.msra.mxu0 0.0
    %572 = vmatprep.subr.mxu0 0.0
    %573 = vmatpush1.msra.mxu0 0.0
    %574 = vmatprep.subr.mxu0 0.0
    %575 = vmatpush1.msra.mxu0 0.0
    %576 = vmatprep.subr.mxu0 0.0
    %577 = vmatpush1.msra.mxu0 0.0
    %578 = vmatprep.subr.mxu0 0.0
    %579 = vmatpush1.msra.mxu0 0.0
    %580 = vmatprep.mubr.f32.mxu0 0.0
    %581 = vmatmul.mubr.f32.gmra.mrb[0].mxu0 %v513
    %v582 = vpop.f32.mrb[0].mxu0
    %v583 = vadd.f32 0.0, %v582
    %v584 = vpop.f32.mrb[0].mxu0
    %585 = vdwg.mxu0
    %v586 = vadd.f32 %v515, %v583
    %v587 = vtanh.pop %v586
    %s588 = scalar_lea.vmem [#allocation2], 56
    %v589 = vld [vmem:[%s588] sm:$0xff]
    %590 = vmatprep.subr.mxu0 0.0
    %591 = vmatpush1.msra.mxu0 %v56
    %592 = vmatprep.subr.mxu0 0.0
    %593 = vmatpush1.msra.mxu0 %v57
    %594 = vmatprep.subr.mxu0 0.0
    %595 = vmatpush1.msra.mxu0 %v58
    %596 = vmatprep.subr.mxu0 0.0
    %597 = vmatpush1.msra.mxu0 %v59
    %598 = vmatprep.subr.mxu0 0.0
    %599 = vmatpush1.msra.mxu0 %v60
    %600 = vmatprep.subr.mxu0 0.0
    %601 = vmatpush1.msra.mxu0 %v61
    %602 = vmatprep.subr.mxu0 0.0
    %603 = vmatpush1.msra.mxu0 %v62
    %604 = vmatprep.subr.mxu0 0.0
    %605 = vmatpush1.msra.mxu0 %v63
    %606 = vmatprep.subr.mxu0 0.0
    %607 = vmatpush1.msra.mxu0 %v64
    %608 = vmatprep.subr.mxu0 0.0
    %609 = vmatpush1.msra.mxu0 %v65
    %610 = vmatprep.subr.mxu0 0.0
    %611 = vmatpush1.msra.mxu0 %v66
    %612 = vmatprep.subr.mxu0 0.0
    %613 = vmatpush1.msra.mxu0 %v67
    %614 = vmatprep.subr.mxu0 0.0
    %615 = vmatpush1.msra.mxu0 %v68
    %616 = vmatprep.subr.mxu0 0.0
    %617 = vmatpush1.msra.mxu0 %v69
    %618 = vmatprep.subr.mxu0 0.0
    %619 = vmatpush1.msra.mxu0 %v70
    %620 = vmatprep.subr.mxu0 0.0
    %621 = vmatpush1.msra.mxu0 %v71
    %622 = vmatprep.subr.mxu0 0.0
    %623 = vmatpush1.msra.mxu0 0.0
    %624 = vmatprep.subr.mxu0 0.0
    %625 = vmatpush1.msra.mxu0 0.0
    %626 = vmatprep.subr.mxu0 0.0
    %627 = vmatpush1.msra.mxu0 0.0
    %628 = vmatprep.subr.mxu0 0.0
    %629 = vmatpush1.msra.mxu0 0.0
    %630 = vmatprep.subr.mxu0 0.0
    %631 = vmatpush1.msra.mxu0 0.0
    %632 = vmatprep.subr.mxu0 0.0
    %633 = vmatpush1.msra.mxu0 0.0
    %634 = vmatprep.subr.mxu0 0.0
    %635 = vmatpush1.msra.mxu0 0.0
    %636 = vmatprep.subr.mxu0 0.0
    %637 = vmatpush1.msra.mxu0 0.0
    %638 = vmatprep.subr.mxu0 0.0
    %639 = vmatpush1.msra.mxu0 0.0
    %640 = vmatprep.subr.mxu0 0.0
    %641 = vmatpush1.msra.mxu0 0.0
    %642 = vmatprep.subr.mxu0 0.0
    %643 = vmatpush1.msra.mxu0 0.0
    %644 = vmatprep.subr.mxu0 0.0
    %645 = vmatpush1.msra.mxu0 0.0
    %646 = vmatprep.subr.mxu0 0.0
    %647 = vmatpush1.msra.mxu0 0.0
    %648 = vmatprep.subr.mxu0 0.0
    %649 = vmatpush1.msra.mxu0 0.0
    %650 = vmatprep.subr.mxu0 0.0
    %651 = vmatpush1.msra.mxu0 0.0
    %652 = vmatprep.subr.mxu0 0.0
    %653 = vmatpush1.msra.mxu0 0.0
    %654 = vmatprep.mubr.f32.mxu0 0.0
    %655 = vmatmul.mubr.f32.gmra.mrb[0].mxu0 %v587
    %v656 = vpop.f32.mrb[0].mxu0
    %v657 = vadd.f32 0.0, %v656
    %v658 = vpop.f32.mrb[0].mxu0
    %659 = vdwg.mxu0
    %v660 = vadd.f32 %v589, %v657
    %v661 = vtanh.pop %v660
    %662 = vst [vmem:[#allocation8] sm:$0xff] %v661
    // Predicated region
    $region26: #{tpu_custom_call.1} parent=1 // pred_check
      _
    $region27: #{tpu_custom_call.1} parent=1 // pred_check_branch
      %664 = sbr.rel (0) target = $region29
    $region28: #{tpu_custom_call.1} parent=1 // pred_region
      %s666 = ssub.s32 128, 128
      %667 = vsyncadd [#allocation4], %s666
      %s669 = sshll.u32 [#allocation8], 4
      %s670 = int_to_ptr.vmem [resolvable:$true] %s669
      %672 = dma.vmem_to_hbm [thread:$0]  %s670, 128, %s3, [#allocation4]
    $region29: #{tpu_custom_call.1} parent=1 // pred_fallthru
      _
    // Predicated region
    $region30: #{tpu_custom_call.1} parent=1 // pred_check
      _
    $region31: #{tpu_custom_call.1} parent=1 // pred_check_branch
      %674 = sbr.rel (0) target = $region33
    $region32: #{tpu_custom_call.1} parent=1 // pred_region
      %675 = dma.done [#allocation4], 128
    $region33: #{tpu_custom_call.1} parent=1 // pred_fallthru
      _
    %676 = vsyncpa [#allocation3], 1
    %677 = vsyncpa [#allocation6], 1
    %678 = vsyncpa [#allocation4], 1

</llo_original>
